<compile_context>
chip_gen: v7x
topology: tpu7x:2x2x1
jax: 0.10.0
libtpu: 0.0.40
codegen_flags: <defaults>
</compile_context>

<pallas_src>
import functools
import math

import jax
import jax.numpy as jnp
from jax.experimental import pallas as pl
from jax.experimental.pallas import tpu as pltpu

BN_EPS = 1e-5
BN_SCALE = 1.0 / math.sqrt(1.0 + BN_EPS)


# ----------------------------------------------------------------------------
# Pallas kernels
# ----------------------------------------------------------------------------
def _conv_kernel(x_ref, w_ref, o_ref, *, tap_offs, m, banded, relu):
    """Direct conv on a flattened padded image.

    x_ref: (1, HpT*Wp, C)  full flattened padded image (bf16, VMEM-resident)
    w_ref: (ntaps, C, OC)  per-tap weight matrices (bf16, BN scale pre-folded)
    o_ref: (1, m, OC)      one output row-band in padded-width coordinates
    """
    base = pl.program_id(1) * m if banded else 0
    acc = None
    for t, off in enumerate(tap_offs):
        lhs = x_ref[0, pl.ds(base + off, m), :]               # (m, C) bf16
        y = jnp.dot(lhs, w_ref[t], preferred_element_type=jnp.float32)
        acc = y if acc is None else acc + y
    if relu:
        acc = jnp.maximum(acc, 0.0)
    o_ref[0, :, :] = acc.astype(o_ref.dtype)


@functools.lru_cache(maxsize=None)
def _get_conv_fn(N, F, C, OC, ntaps, m, n_bands, tap_offs, relu, out_dtype_name):
    out_dtype = jnp.dtype(out_dtype_name)
    kern = functools.partial(_conv_kernel, tap_offs=tap_offs, m=m,
                             banded=(n_bands > 1), relu=relu)
    if n_bands > 1:
        grid = (N, n_bands)
        x_spec = pl.BlockSpec((1, F, C), lambda n, b: (n, 0, 0))
        w_spec = pl.BlockSpec((ntaps, C, OC), lambda n, b: (0, 0, 0))
        o_spec = pl.BlockSpec((1, m, OC), lambda n, b: (n, b, 0))
        sem = ("parallel", "parallel")
    else:
        grid = (N,)
        x_spec = pl.BlockSpec((1, F, C), lambda n: (n, 0, 0))
        w_spec = pl.BlockSpec((ntaps, C, OC), lambda n: (0, 0, 0))
        o_spec = pl.BlockSpec((1, m, OC), lambda n: (n, 0, 0))
        sem = ("parallel",)
    f = pl.pallas_call(
        kern,
        out_shape=jax.ShapeDtypeStruct((N, n_bands * m, OC), out_dtype),
        grid=grid,
        in_specs=[x_spec, w_spec],
        out_specs=o_spec,
        compiler_params=pltpu.CompilerParams(dimension_semantics=sem),
    )
    return jax.jit(f)


def _add_bn_kernel(*refs, n_in, scale, relu):
    """Fused N-way add + eval-mode BatchNorm affine + optional ReLU."""
    o_ref = refs[n_in]
    acc = refs[0][...].astype(jnp.float32)
    for i in range(1, n_in):
        acc = acc + refs[i][...].astype(jnp.float32)
    acc = acc * scale
    if relu:
        acc = jnp.maximum(acc, 0.0)
    o_ref[...] = acc.astype(o_ref.dtype)


def _pick_rows(M, target=2048):
    if M <= target:
        return M
    t = math.gcd(M, target)
    return t if t >= 8 else M


@functools.lru_cache(maxsize=None)
def _get_add_bn_fn(M, C, n_in, relu, scale):
    rows = _pick_rows(M)
    kern = functools.partial(_add_bn_kernel, n_in=n_in, scale=scale, relu=relu)
    f = pl.pallas_call(
        kern,
        out_shape=jax.ShapeDtypeStruct((M, C), jnp.bfloat16),
        grid=(M // rows,),
        in_specs=[pl.BlockSpec((rows, C), lambda i: (i, 0)) for _ in range(n_in)],
        out_specs=pl.BlockSpec((rows, C), lambda i: (i, 0)),
        compiler_params=pltpu.CompilerParams(dimension_semantics=("parallel",)),
    )
    return jax.jit(f)


def add_bn_act(xs, relu=True, scale=BN_SCALE):
    """relu(BN_eval(sum(xs))) over NHWC tensors, fused into one Pallas pass."""
    N, H, W, C = xs[0].shape
    M = N * H * W
    flat = [x.reshape(M, C) for x in xs]
    out = _get_add_bn_fn(M, C, len(xs), bool(relu), float(scale))(*flat)
    return out.reshape(N, H, W, C)


# ----------------------------------------------------------------------------
# Convolution wrappers
# ----------------------------------------------------------------------------
def _pick_band(n_rows, wp, target=2048):
    """Split n_rows output rows into bands so band*wp stays near `target`
    (bounds the per-step f32 accumulator) and is 8-aligned when banded."""
    if n_rows * wp <= target:
        return n_rows, 1
    step = 8 // math.gcd(wp, 8)
    band = max(step, (target // wp) // step * step)
    n_bands = -(-n_rows // band)
    return band, n_bands


def conv_direct(x, p, out_dtype=jnp.bfloat16):
    """Stride-1 'same' conv (odd kernels), BN scale folded into weights."""
    wt = p["wt"]                                   # (kh*kw, C, OC) bf16
    kh, kw, d = p["kh"], p["kw"], p["dilation"]
    ntaps, C, OC = wt.shape
    N, H, W, Cx = x.shape
    assert Cx == C and kh % 2 == 1 and kw % 2 == 1
    ph = (kh - 1) // 2 * d
    pw = (kw - 1) // 2 * d
    OH, OW = H, W
    Wp = W + 2 * pw
    band, n_bands = _pick_band(OH, Wp)
    rows_total = n_bands * band
    # Enough padded rows for every tap of every (possibly band-padded) output
    # row, plus one spare row so flat per-tap slabs never read past the block.
    HpT = rows_total + 2 * ph + (1 if kw > 1 else 0)
    xp = jnp.pad(x, ((0, 0), (ph, HpT - H - ph), (pw, pw), (0, 0)))
    xf = xp.reshape(N, HpT * Wp, C)
    tap_offs = tuple(ti * d * Wp + tj * d for ti in range(kh) for tj in range(kw))
    fn = _get_conv_fn(N, HpT * Wp, C, OC, ntaps, band * Wp, n_bands,
                      tap_offs, p["relu"], jnp.dtype(out_dtype).name)
    out = fn(xf, wt)                               # (N, rows_total*Wp, OC)
    # Output is in padded-width coordinates; drop the wrap-around columns.
    return out.reshape(N, rows_total, Wp, OC)[:, :OH, :OW, :]


def conv_strided(x, p, out_dtype=jnp.bfloat16):
    """Strided conv (k3s2 / k2s2 only): small im2col + same matmul kernel."""
    wt = p["wt"]                                   # (kh*kw, C, OC)
    kh, kw, s = p["kh"], p["kw"], p["stride"]
    ntaps, C, OC = wt.shape
    N, H, W, Cx = x.shape
    assert Cx == C
    ph, pw = (kh - 1) // 2, (kw - 1) // 2
    xp = jnp.pad(x, ((0, 0), (ph, ph), (pw, pw), (0, 0)))
    Hp, Wq = H + 2 * ph, W + 2 * pw
    oh = (Hp - kh) // s + 1
    ow = (Wq - kw) // s + 1
    cols = [xp[:, i:i + (oh - 1) * s + 1:s, j:j + (ow - 1) * s + 1:s, :]
            for i in range(kh) for j in range(kw)]
    col = jnp.concatenate(cols, axis=-1)           # (N, oh, ow, ntaps*C)
    K = ntaps * C
    M = oh * ow
    xf = col.reshape(N, M, K)
    band, n_bands = _pick_band(M, 1)
    rows_total = n_bands * band
    if rows_total > M:
        xf = jnp.pad(xf, ((0, 0), (0, rows_total - M), (0, 0)))
    fn = _get_conv_fn(N, rows_total, K, OC, 1, band, n_bands,
                      (0,), p["relu"], jnp.dtype(out_dtype).name)
    out = fn(xf, wt.reshape(1, K, OC))             # (N, rows_total, OC)
    return out[:, :M, :].reshape(N, oh, ow, OC)


def apply_conv(p, x, out_dtype=jnp.bfloat16):
    if p["stride"] == 1:
        return conv_direct(x, p, out_dtype)
    return conv_strided(x, p, out_dtype)


def upsample_nearest(x, size):
    """F.interpolate(mode='nearest'); fast broadcast path for exact 2x."""
    N, H, W, C = x.shape
    Ho, Wo = size
    if Ho == 2 * H and Wo == 2 * W:
        y = jnp.broadcast_to(x[:, :, None, :, None, :], (N, H, 2, W, 2, C))
        return y.reshape(N, Ho, Wo, C)
    hi = (jnp.arange(Ho) * H // Ho).astype(jnp.int32)
    wi = (jnp.arange(Wo) * W // Wo).astype(jnp.int32)
    return x[:, hi][:, :, wi]


# ----------------------------------------------------------------------------
# Parameter generation (mirrors the PyTorch module shapes)
# ----------------------------------------------------------------------------
class PGen:
    def __init__(self, seed=0):
        self.key = jax.random.PRNGKey(seed)
        self.count = 0

    def conv(self, out_c, in_c, kh, kw):
        self.count += 1
        k = jax.random.fold_in(self.key, self.count)
        fan_in = in_c * kh * kw
        return (jax.random.normal(k, (out_c, in_c, kh, kw), jnp.float32)
                * (1.0 / math.sqrt(float(fan_in))))


def init_conv(pg, ic, oc, ksize, stride=1, dilation=1, act='relu', bn=True):
    kh, kw = (ksize, ksize) if isinstance(ksize, int) else ksize
    w = pg.conv(oc, ic, kh, kw)                               # (OC, IC, kh, kw)
    wt = jnp.transpose(w, (2, 3, 1, 0)).reshape(kh * kw, ic, oc)
    if bn:                                                    # fold eval-mode BN scale
        wt = wt * BN_SCALE
    return {"wt": wt.astype(jnp.bfloat16), "kh": kh, "kw": kw,
            "stride": stride, "dilation": dilation, "relu": act == "relu"}


def init_widescope(pg, ic, oc):
    return [init_conv(pg, ic, oc, 3),
            init_conv(pg, oc, oc, 3, dilation=2),
            init_conv(pg, oc, oc, 3, dilation=3)]


def init_midscope(pg, ic, oc):
    return [init_conv(pg, ic, oc, 3),
            init_conv(pg, oc, oc, 3, dilation=2)]


def init_separated(pg, ic, oc, fs):
    return [init_conv(pg, ic, oc, (1, fs)),
            init_conv(pg, oc, oc, (fs, 1))]


def init_residual(pg, ic, oc):
    return {"upper": init_conv(pg, ic, oc, 1, act="none", bn=False),
            "lower": [init_conv(pg, ic, oc, 3), init_conv(pg, oc, oc, 3)]}


def init_duck(pg, ic, oc, fs=7):
    return {"b1": init_widescope(pg, ic, oc),
            "b2": init_midscope(pg, ic, oc),
            "b3": init_residual(pg, ic, oc),
            "b4": [init_residual(pg, ic, oc), init_residual(pg, oc, oc)],
            "b5": [init_residual(pg, ic, oc), init_residual(pg, oc, oc),
                   init_residual(pg, oc, oc)],
            "b6": init_separated(pg, ic, oc, fs)}


def init_down(pg, ic, oc, fuse=None):
    fuse = ic if fuse is None else fuse
    return {"duck": init_duck(pg, ic, fuse),
            "conv1": init_conv(pg, fuse, oc, 3, stride=2),
            "conv2": init_conv(pg, ic, oc, 2, stride=2)}


def init_up(pg, ic, oc):
    return {"duck": init_duck(pg, ic, oc)}


def init_ducknet(pg, in_c, num_classes, base=17):
    return {
        "d1": init_down(pg, in_c, base * 2, fuse=base),
        "d2": init_down(pg, base * 2, base * 4),
        "d3": init_down(pg, base * 4, base * 8),
        "d4": init_down(pg, base * 8, base * 16),
        "d5": init_down(pg, base * 16, base * 32),
        "mid": [init_residual(pg, base * 32, base * 32),
                init_residual(pg, base * 32, base * 32),
                init_residual(pg, base * 32, base * 16),
                init_residual(pg, base * 16, base * 16)],
        "u5": init_up(pg, base * 16, base * 8),
        "u4": init_up(pg, base * 8, base * 4),
        "u3": init_up(pg, base * 4, base * 2),
        "u2": init_up(pg, base * 2, base),
        "u1": init_up(pg, base, base),
        "seg": init_conv(pg, base, num_classes, 1, act="none", bn=False),
    }


# ----------------------------------------------------------------------------
# Forward pass
# ----------------------------------------------------------------------------
def apply_seq(ps, x):
    for p in ps:
        x = apply_conv(p, x)
    return x


def apply_residual(p, x):
    up = apply_conv(p["upper"], x)                 # 1x1 conv, no bn/act
    low = apply_seq(p["lower"], x)
    return add_bn_act([up, low], relu=True)        # fused add + BN + ReLU


def apply_duck(p, addends):
    x = add_bn_act(addends, relu=True)             # in_bn fused with incoming sum
    x1 = apply_seq(p["b1"], x)
    x2 = apply_seq(p["b2"], x)
    x3 = apply_residual(p["b3"], x)
    x4 = x
    for rp in p["b4"]:
        x4 = apply_residual(rp, x4)
    x5 = x
    for rp in p["b5"]:
        x5 = apply_residual(rp, x5)
    x6 = apply_seq(p["b6"], x)
    return add_bn_act([x1, x2, x3, x4, x5, x6], relu=True)   # 6-way sum + out_bn


def apply_down(p, duck_addends, x2=None):
    conv2_in = duck_addends[0] if x2 is None else x2
    x2o = apply_conv(p["conv2"], conv2_in)
    skip = apply_duck(p["duck"], duck_addends)
    x1o = apply_conv(p["conv1"], skip)
    return x1o, skip, x2o


def apply_up(p, x, residual):
    xu = upsample_nearest(x, residual.shape[1:3])
    return apply_duck(p["duck"], [xu, residual])   # upsample+skip add fused into in_bn


def ducknet_forward(p, x_nchw):
    x = jnp.transpose(x_nchw, (0, 2, 3, 1)).astype(jnp.bfloat16)  # NCHW -> NHWC
    x1, x1s, x = apply_down(p["d1"], [x])
    x2, x2s, x = apply_down(p["d2"], [x1, x], x)
    x3, x3s, x = apply_down(p["d3"], [x2, x], x)
    x4, x4s, x = apply_down(p["d4"], [x3, x], x)
    x5, x5s, x = apply_down(p["d5"], [x4, x], x)
    x = x5 + x
    for rp in p["mid"]:
        x = apply_residual(rp, x)
    x = apply_up(p["u5"], x, x5s)
    x = apply_up(p["u4"], x, x4s)
    x = apply_up(p["u3"], x, x3s)
    x = apply_up(p["u2"], x, x2s)
    x = apply_up(p["u1"], x, x1s)
    x = conv_direct(x, p["seg"], out_dtype=jnp.float32)           # seg head
    return jnp.transpose(x, (0, 3, 1, 2))                         # NHWC -> NCHW


if __name__ == "__main__":
    base_channel = 2       # small synthetic config (module default is 17)
    in_channel, num_classes = 3, 2
    N, H, W = 2, 32, 32    # spatial must be divisible by 32 (5 down stages)

    pg = PGen(seed=0)
    params = init_ducknet(pg, in_channel, num_classes, base=base_channel)

    x = jax.random.normal(jax.random.PRNGKey(0),
                          (N, in_channel, H, W), jnp.float32)

    out = ducknet_forward(params, x)
    out = jax.block_until_ready(out)
    assert out.shape == (N, num_classes, H, W), out.shape
    assert bool(jnp.all(jnp.isfinite(out)))
    print("KERNEL_OK")
</pallas_src>

<mosaic_0001>
module attributes {stable_mosaic.version = 11 : i64} {
  func.func @_conv_kernel(%arg0: i32, %arg1: memref<1x256x12xbf16, #tpu.memory_space<vmem>>, %arg2: memref<1x12x4xbf16, #tpu.memory_space<vmem>>, %arg3: memref<1x256x4xbf16, #tpu.memory_space<vmem>>) attributes {dimension_semantics = [#tpu.dimension_semantics<parallel>], iteration_bounds = array<i64: 2>, scalar_prefetch = 0 : i64, scratch_operands = 0 : i64, tpu.core_type = #tpu.core_type<tc>, window_params = [{transform_indices = @transform_0, window_bounds = array<i64: 1, 256, 12>}, {pipeline_mode = #tpu.pipeline_mode<synchronous>, transform_indices = @transform_1, window_bounds = array<i64: 1, 12, 4>}, {transform_indices = @transform_2, window_bounds = array<i64: 1, 256, 4>}]} {
    %c0 = arith.constant 0 : index
    %c0_0 = arith.constant 0 : index
    %c0_1 = arith.constant 0 : index
    %0 = vector.load %arg1[%c0, %c0_0, %c0_1] : memref<1x256x12xbf16, #tpu.memory_space<vmem>>, vector<1x256x12xbf16>
    %1 = vector.shape_cast %0 : vector<1x256x12xbf16> to vector<256x12xbf16>
    %c0_2 = arith.constant 0 : index
    %c0_3 = arith.constant 0 : index
    %c0_4 = arith.constant 0 : index
    %2 = vector.load %arg2[%c0_2, %c0_3, %c0_4] : memref<1x12x4xbf16, #tpu.memory_space<vmem>>, vector<1x12x4xbf16>
    %3 = vector.shape_cast %2 : vector<1x12x4xbf16> to vector<12x4xbf16>
    %cst = arith.constant dense<0.000000e+00> : vector<256x4xf32>
    %4 = tpu.matmul %1, %3, %cst {dimension_numbers = #tpu.dot_dimension_numbers<[1], [0], [0], [1], [0, 0, 1, 1], [], []>} : vector<256x12xbf16>, vector<12x4xbf16>, vector<256x4xf32> -> vector<256x4xf32>
    %cst_5 = arith.constant 0.000000e+00 : f32
    %5 = vector.broadcast %cst_5 : f32 to vector<256x4xf32>
    %6 = arith.maximumf %4, %5 : vector<256x4xf32>
    %7 = arith.truncf %6 : vector<256x4xf32> to vector<256x4xbf16>
    %c0_6 = arith.constant 0 : index
    %c0_7 = arith.constant 0 : index
    %c0_8 = arith.constant 0 : index
    %8 = vector.load %arg3[%c0_6, %c0_7, %c0_8] : memref<1x256x4xbf16, #tpu.memory_space<vmem>>, vector<1x256x4xbf16>
    %9 = vector.shape_cast %8 : vector<1x256x4xbf16> to vector<256x4xbf16>
    %10 = vector.shape_cast %7 : vector<256x4xbf16> to vector<1x256x4xbf16>
    tpu.vector_store %arg3[%c0_6, %c0_7, %c0_8], %10 {strides = array<i32>} : memref<1x256x4xbf16, #tpu.memory_space<vmem>>, vector<1x256x4xbf16>,
    return
  }
  func.func @transform_0(%arg0: i32) -> (i32, i32, i32) {
    %c0_i32 = arith.constant 0 : i32
    %c0_i32_0 = arith.constant 0 : i32
    %c0_i32_1 = arith.constant 0 : i32
    return %arg0, %c0_i32, %c0_i32_0 : i32, i32, i32
  }
  func.func @transform_1(%arg0: i32) -> (i32, i32, i32) {
    %c0_i32 = arith.constant 0 : i32
    %c0_i32_0 = arith.constant 0 : i32
    %c0_i32_1 = arith.constant 0 : i32
    %c0_i32_2 = arith.constant 0 : i32
    return %c0_i32, %c0_i32_0, %c0_i32_1 : i32, i32, i32
  }
  func.func @transform_2(%arg0: i32) -> (i32, i32, i32) {
    %c0_i32 = arith.constant 0 : i32
    %c0_i32_0 = arith.constant 0 : i32
    %c0_i32_1 = arith.constant 0 : i32
    return %arg0, %c0_i32, %c0_i32_0 : i32, i32, i32
  }
}

</mosaic_0001>

<llo_original>
// kernel: tpu_custom_call.1
$region0: #{tpu_custom_call.1}
  #allocation0 [shape = 'u32[]', space=smem, size = 0x4, offset = 0x4, fixed_abs, tag = 'smem constant byte address 0x4 - core index']
  #allocation1 [shape = 'u32[144,128]{1,0:T(1,128)}', space=vmem, size = 0x12000, scoped, tag = 'internal scratch']
  %s0 = inlined_call_operand.vmem [shape: bf16[2,256,12], index: 0, kind: input, shape index: {}]
  %s1 = inlined_call_operand.vmem [shape: bf16[1,12,4], index: 1, kind: input, shape index: {}]
  %s2 = inlined_call_operand.vmem [shape: bf16[2,256,4], index: 2, kind: output, shape index: {}]
  %s3 = sld [smem:[#allocation0]]
  $region41: #{tpu_custom_call.1} parent=0
    _
  %s5 = ssub.s32 1, %s3
  %s6 = scalar_select 0, %s5, %s3
  loop: start=0, step=1, limit=4
  $region2: #{tpu_custom_call.1} parent=0 // loop_pre_header
    _
  $region3: #{tpu_custom_call.1} parent=0 // loop_header
    %s8 = sphi 0, %s12
    %p9 = scmp.ge.s32.totalorder %s8, 4
    %s18 = sphi 0, %s20
    %s21 = sphi 0, %s18
    %s22 = sphi 0, %s21
    %s38 = sphi 0, %s22
    %s42 = sphi 0, %s42
    %s44 = sphi 0, %s42
    %s45 = sphi 0, %s44
    %s59 = sphi 0, %s45
    %s65 = sphi 0, %s67
    %s68 = sphi 0, %s65
    %s69 = sphi 0, %s68
    %s85 = sphi 0, %s69
  $region4: #{tpu_custom_call.1} parent=0 // loop_header_branch
    %11 = sbr.rel (%p9) target = $region8
  $region5: #{tpu_custom_call.1} parent=0 // loop_body
    %s13 = ssub.s32 %s8, 1
    %s14 = ssub.s32 %s8, 2
    %s15 = sadd.s32 %s8, 1
    %s16 = ssub.s32 %s8, %s15
    %p17 = scmp.eq.s32.totalorder %s16, 0
    %s19 = sadd.s32 %s18, 1
    %s20 = scalar_select %p17, %s18, %s19
    %p23 = pneg %p17
    %p24 = scmp.eq.s32.totalorder %s8, 1
    %p25 = por %p23, %p24
    %p26 = scmp.ne.s32.totalorder %s18, %s21
    %p27 = scmp.eq.s32.totalorder %s8, 0
    %p28 = por %p26, %p27
    %p29 = scmp.ne.s32.totalorder %s18, %s21
    %p30 = scmp.eq.s32.totalorder %s13, 1
    %p31 = por %p29, %p30
    %p32 = scmp.ne.s32.totalorder %s21, %s22
    %p33 = scmp.eq.s32.totalorder %s13, 0
    %p34 = por %p32, %p33
    %p35 = scmp.ne.s32.totalorder %s21, %s22
    %p36 = scmp.eq.s32.totalorder %s14, 1
    %p37 = por %p35, %p36
    %p39 = scmp.ne.s32.totalorder %s22, %s38
    %p40 = scmp.eq.s32.totalorder %s14, 0
    %p41 = por %p39, %p40
    %s43 = sadd.s32 %s42, 1
    %p46 = scmp.eq.s32.totalorder %s8, 1
    %p47 = scmp.ne.s32.totalorder %s42, %s44
    %p48 = scmp.eq.s32.totalorder %s8, 0
    %p49 = por %p47, %p48
    %p50 = scmp.ne.s32.totalorder %s42, %s44
    %p51 = scmp.eq.s32.totalorder %s13, 1
    %p52 = por %p50, %p51
    %p53 = scmp.ne.s32.totalorder %s44, %s45
    %p54 = scmp.eq.s32.totalorder %s13, 0
    %p55 = por %p53, %p54
    %p56 = scmp.ne.s32.totalorder %s44, %s45
    %p57 = scmp.eq.s32.totalorder %s14, 1
    %p58 = por %p56, %p57
    %p60 = scmp.ne.s32.totalorder %s45, %s59
    %p61 = scmp.eq.s32.totalorder %s14, 0
    %p62 = por %p60, %p61
    %s63 = ssub.s32 %s8, %s15
    %p64 = scmp.eq.s32.totalorder %s63, 0
    %s66 = sadd.s32 %s65, 1
    %s67 = scalar_select %p64, %s65, %s66
    %p70 = pneg %p64
    %p71 = scmp.eq.s32.totalorder %s8, 1
    %p72 = por %p70, %p71
    %p73 = scmp.ne.s32.totalorder %s65, %s68
    %p74 = scmp.eq.s32.totalorder %s8, 0
    %p75 = por %p73, %p74
    %p76 = scmp.ne.s32.totalorder %s65, %s68
    %p77 = scmp.eq.s32.totalorder %s13, 1
    %p78 = por %p76, %p77
    %p79 = scmp.ne.s32.totalorder %s68, %s69
    %p80 = scmp.eq.s32.totalorder %s13, 0
    %p81 = por %p79, %p80
    %p82 = scmp.ne.s32.totalorder %s68, %s69
    %p83 = scmp.eq.s32.totalorder %s14, 1
    %p84 = por %p82, %p83
    %p86 = scmp.ne.s32.totalorder %s69, %s85
    %p87 = scmp.eq.s32.totalorder %s14, 0
    %p88 = por %p86, %p87
    %p89 = scmp.le.s32.totalorder 1, %s8
    %p90 = scmp.lt.s32.totalorder %s8, 3
    %p91 = pnand %p89, %p90
    %p92 = pneg %p91
    // Predicated region
    $region9: #{tpu_custom_call.1} parent=5 // pred_check
      _
    $region10: #{tpu_custom_call.1} parent=5 // pred_check_branch
      %94 = sbr.rel (%p91) target = $region12
    $region11: #{tpu_custom_call.1} parent=5 // pred_region
      %s95 = ssub.s32 %s8, 1
      // Predicated region
      $region13: #{tpu_custom_call.1} parent=11 // pred_check
        %p96 = pneg %p55
      $region14: #{tpu_custom_call.1} parent=11 // pred_check_branch
        %98 = sbr.rel (%p96) target = $region16
      $region15: #{tpu_custom_call.1} parent=11 // pred_region
        _
      $region16: #{tpu_custom_call.1} parent=11 // pred_fallthru
        _
    $region12: #{tpu_custom_call.1} parent=5 // pred_fallthru
      _
    %p99 = scmp.lt.s32.totalorder %s8, 2
    // Predicated region
    $region17: #{tpu_custom_call.1} parent=5 // pred_check
      %p100 = pneg %p99
    $region18: #{tpu_custom_call.1} parent=5 // pred_check_branch
      %102 = sbr.rel (%p100) target = $region20
    $region19: #{tpu_custom_call.1} parent=5 // pred_region
      // Predicated region
      $region21: #{tpu_custom_call.1} parent=19 // pred_check
        %p103 = pneg %p28
      $region22: #{tpu_custom_call.1} parent=19 // pred_check_branch
        %105 = sbr.rel (%p103) target = $region24
      $region23: #{tpu_custom_call.1} parent=19 // pred_region
        %p106 = scmp.lt.s32.totalorder %s8, 1
        %s107 = scalar_select %p106, %s8, 1
        %s108 = smul.addr %s107, 32
        %s109 = smul.addr %s108, 4
        %s110 = scalar_lea.vmem %s0, %s109
      $region24: #{tpu_custom_call.1} parent=19 // pred_fallthru
        _
    $region20: #{tpu_custom_call.1} parent=5 // pred_fallthru
      _
    %p111 = scmp.le.s32.totalorder 1, %s8
    %p112 = scmp.lt.s32.totalorder %s8, 3
    %p113 = pnand %p111, %p112
    %p114 = pneg %p113
    // Predicated region
    $region25: #{tpu_custom_call.1} parent=5 // pred_check
      _
    $region26: #{tpu_custom_call.1} parent=5 // pred_check_branch
      %116 = sbr.rel (%p113) target = $region28
    $region27: #{tpu_custom_call.1} parent=5 // pred_region
      %s117 = ssub.s32 %s8, 1
      %p118 = scmp.lt.s32.totalorder %s13, 1
      %s119 = scalar_select %p118, %s13, 1
      %s120 = smul.addr %s119, 32
      %s121 = smul.addr %s120, 4
      %s122 = scalar_lea.vmem %s0, %s121
      %p123 = pneg %p34
      %p124 = pneg %p31
      %p125 = pneg %p55
      %p126 = pneg %p52
      %p127 = pneg %p81
      %p128 = pneg %p78
      %p129 = scmp.lt.s32.totalorder %s13, 1
      %s130 = scalar_select %p129, %s13, 1
      %s131 = smul.addr %s130, 32
      %s132 = smul.addr %s131, 4
      %s133 = scalar_lea.vmem %s2, %s132
      %p134 = scmp.lt.s32.totalorder %s13, 1
      %s135 = scalar_select %p134, %s13, 1
      %s136 = smul.addr %s135, 32
      %s137 = smul.addr %s136, 4
      %s138 = scalar_lea.vmem %s0, %s137
      %p139 = scmp.lt.s32.totalorder %s13, 1
      %s140 = scalar_select %p139, %s13, 1
      %s141 = smul.addr %s140, 32
      %s142 = smul.addr %s141, 4
      %s143 = scalar_lea.vmem %s2, %s142
      %v145 = vld [vmem:[%s138] sm:$0xf]
      %v146 = vld [vmem:[%s138 + $0x4] sm:$0xf]
      %v147 = vld [vmem:[%s138 + $0x8] sm:$0xf]
      %v148 = vld [vmem:[%s138 + $0xc] sm:$0xf]
      %v149 = vld [vmem:[%s138 + $0x10] sm:$0xf]
      %v150 = vld [vmem:[%s138 + $0x14] sm:$0xf]
      %v151 = vld [vmem:[%s138 + $0x18] sm:$0xf]
      %v152 = vld [vmem:[%s138 + $0x1c] sm:$0xf]
      %v153 = vld [vmem:[%s138 + $0x20] sm:$0xf]
      %v154 = vld [vmem:[%s138 + $0x24] sm:$0xf]
      %v155 = vld [vmem:[%s138 + $0x28] sm:$0xf]
      %v156 = vld [vmem:[%s138 + $0x2c] sm:$0xf]
      %v157 = vld [vmem:[%s138 + $0x30] sm:$0xf]
      %v158 = vld [vmem:[%s138 + $0x34] sm:$0xf]
      %v159 = vld [vmem:[%s138 + $0x38] sm:$0xf]
      %v160 = vld [vmem:[%s138 + $0x3c] sm:$0xf]
      %v161 = vld [vmem:[%s138 + $0x40] sm:$0xf]
      %v162 = vld [vmem:[%s138 + $0x44] sm:$0xf]
      %v163 = vld [vmem:[%s138 + $0x48] sm:$0xf]
      %v164 = vld [vmem:[%s138 + $0x4c] sm:$0xf]
      %v165 = vld [vmem:[%s138 + $0x50] sm:$0xf]
      %v166 = vld [vmem:[%s138 + $0x54] sm:$0xf]
      %v167 = vld [vmem:[%s138 + $0x58] sm:$0xf]
      %v168 = vld [vmem:[%s138 + $0x5c] sm:$0xf]
      %v169 = vld [vmem:[%s138 + $0x60] sm:$0xf]
      %v170 = vld [vmem:[%s138 + $0x64] sm:$0xf]
      %v171 = vld [vmem:[%s138 + $0x68] sm:$0xf]
      %v172 = vld [vmem:[%s138 + $0x6c] sm:$0xf]
      %v173 = vld [vmem:[%s138 + $0x70] sm:$0xf]
      %v174 = vld [vmem:[%s138 + $0x74] sm:$0xf]
      %v175 = vld [vmem:[%s138 + $0x78] sm:$0xf]
      %v176 = vld [vmem:[%s138 + $0x7c] sm:$0xf]
      %v177 = vld [vmem:[%s1] sm:$0xf]
      %v178 = vld [vmem:[%s1 + $0x4] sm:$0x3]
      %v211 = vunpack.c.l.b16 %v145
      %v212 = vunpack.c.l.b16 %v146
      %v213 = vunpack.c.l.b16 %v147
      %v214 = vunpack.c.l.b16 %v148
      %v215 = vunpack.c.l.b16 %v149
      %v216 = vunpack.c.l.b16 %v150
      %v217 = vunpack.c.l.b16 %v151
      %v218 = vunpack.c.l.b16 %v152
      %v219 = vunpack.c.l.b16 %v153
      %v220 = vunpack.c.l.b16 %v154
      %v221 = vunpack.c.l.b16 %v155
      %v222 = vunpack.c.l.b16 %v156
      %v223 = vunpack.c.l.b16 %v157
      %v224 = vunpack.c.l.b16 %v158
      %v225 = vunpack.c.l.b16 %v159
      %v226 = vunpack.c.l.b16 %v160
      %v227 = vunpack.c.l.b16 %v161
      %v228 = vunpack.c.l.b16 %v162
      %v229 = vunpack.c.l.b16 %v163
      %v230 = vunpack.c.l.b16 %v164
      %v231 = vunpack.c.l.b16 %v165
      %v232 = vunpack.c.l.b16 %v166
      %v233 = vunpack.c.l.b16 %v167
      %v234 = vunpack.c.l.b16 %v168
      %v235 = vunpack.c.l.b16 %v169
      %v236 = vunpack.c.l.b16 %v170
      %v237 = vunpack.c.l.b16 %v171
      %v238 = vunpack.c.l.b16 %v172
      %v239 = vunpack.c.l.b16 %v173
      %v240 = vunpack.c.l.b16 %v174
      %v241 = vunpack.c.l.b16 %v175
      %v242 = vunpack.c.l.b16 %v176
      %v243 = vpack.c.b16 %v212, %v211
      %v244 = vpack.c.b16 %v214, %v213
      %v245 = vpack.c.b16 %v216, %v215
      %v246 = vpack.c.b16 %v218, %v217
      %v247 = vpack.c.b16 %v220, %v219
      %v248 = vpack.c.b16 %v222, %v221
      %v249 = vpack.c.b16 %v224, %v223
      %v250 = vpack.c.b16 %v226, %v225
      %v251 = vpack.c.b16 %v228, %v227
      %v252 = vpack.c.b16 %v230, %v229
      %v253 = vpack.c.b16 %v232, %v231
      %v254 = vpack.c.b16 %v234, %v233
      %v255 = vpack.c.b16 %v236, %v235
      %v256 = vpack.c.b16 %v238, %v237
      %v257 = vpack.c.b16 %v240, %v239
      %v258 = vpack.c.b16 %v242, %v241
      %v261 = vunpack.c.l.b16 %v177
      %v262 = vunpack.c.l.b16 %v178
      %v263 = vpack.c.b16 %v262, %v261
      %vm264 = vcmask 97280
      %v266 = vsel %vm264, %v243, 0
      %v269 = vsel %vm264, %v244, 0
      %v272 = vsel %vm264, %v245, 0
      %v275 = vsel %vm264, %v246, 0
      %v278 = vsel %vm264, %v247, 0
      %v281 = vsel %vm264, %v248, 0
      %v284 = vsel %vm264, %v249, 0
      %v287 = vsel %vm264, %v250, 0
      %v290 = vsel %vm264, %v251, 0
      %v293 = vsel %vm264, %v252, 0
      %v296 = vsel %vm264, %v253, 0
      %v299 = vsel %vm264, %v254, 0
      %v302 = vsel %vm264, %v255, 0
      %v305 = vsel %vm264, %v256, 0
      %v308 = vsel %vm264, %v257, 0
      %v311 = vsel %vm264, %v258, 0
      %vm313 = vcmask 1045504
      %v315 = vsel %vm313, %v263, 0
      %317 = vmatprep.subr.bf16.mxu0 0
      %318 = vmatpush1.bf16.msra.mxu0 %v315
      %319 = vmatprep.subr.bf16.mxu0 0
      %320 = vmatpush1.bf16.msra.mxu0 0
      %321 = vmatprep.subr.bf16.mxu0 0
      %322 = vmatpush1.bf16.msra.mxu0 0
      %323 = vmatprep.subr.bf16.mxu0 0
      %324 = vmatpush1.bf16.msra.mxu0 0
      %325 = vmatprep.subr.bf16.mxu0 0
      %326 = vmatpush1.bf16.msra.mxu0 0
      %327 = vmatprep.subr.bf16.mxu0 0
      %328 = vmatpush1.bf16.msra.mxu0 0
      %329 = vmatprep.subr.bf16.mxu0 0
      %330 = vmatpush1.bf16.msra.mxu0 0
      %331 = vmatprep.subr.bf16.mxu0 0
      %332 = vmatpush1.bf16.msra.mxu0 0
      %333 = vmatprep.subr.bf16.mxu0 0
      %334 = vmatpush1.bf16.msra.mxu0 0
      %335 = vmatprep.subr.bf16.mxu0 0
      %336 = vmatpush1.bf16.msra.mxu0 0
      %337 = vmatprep.subr.bf16.mxu0 0
      %338 = vmatpush1.bf16.msra.mxu0 0
      %339 = vmatprep.subr.bf16.mxu0 0
      %340 = vmatpush1.bf16.msra.mxu0 0
      %341 = vmatprep.subr.bf16.mxu0 0
      %342 = vmatpush1.bf16.msra.mxu0 0
      %343 = vmatprep.subr.bf16.mxu0 0
      %344 = vmatpush1.bf16.msra.mxu0 0
      %345 = vmatprep.subr.bf16.mxu0 0
      %346 = vmatpush1.bf16.msra.mxu0 0
      %347 = vmatprep.subr.bf16.mxu0 0
      %348 = vmatpush1.bf16.msra.mxu0 0
      %349 = vmatprep.mubr.bf16.mxu0 0
      %350 = vmatmul.mubr.bf16.gmra.mrb[0].mxu0 %v266
      %v351 = vpop.f32.mrb[0].mxu0
      %v352 = vadd.f32 0.0, %v351
      %v353 = vpop.f32.mrb[0].mxu0
      %v354 = vpop.f32.mrb[0].mxu0
      %v355 = vadd.f32 0.0, %v354
      %v356 = vpop.f32.mrb[0].mxu0
      %357 = vmatprep.mubr.bf16.mxu0 0
      %358 = vmatmul.mubr.bf16.gmra.mrb[0].mxu0 %v269
      %v359 = vpop.f32.mrb[0].mxu0
      %v360 = vadd.f32 0.0, %v359
      %v361 = vpop.f32.mrb[0].mxu0
      %v362 = vpop.f32.mrb[0].mxu0
      %v363 = vadd.f32 0.0, %v362
      %v364 = vpop.f32.mrb[0].mxu0
      %365 = vmatprep.mubr.bf16.mxu0 0
      %366 = vmatmul.mubr.bf16.gmra.mrb[0].mxu0 %v272
      %v367 = vpop.f32.mrb[0].mxu0
      %v368 = vadd.f32 0.0, %v367
      %v369 = vpop.f32.mrb[0].mxu0
      %v370 = vpop.f32.mrb[0].mxu0
      %v371 = vadd.f32 0.0, %v370
      %v372 = vpop.f32.mrb[0].mxu0
      %373 = vmatprep.mubr.bf16.mxu0 0
      %374 = vmatmul.mubr.bf16.gmra.mrb[0].mxu0 %v275
      %v375 = vpop.f32.mrb[0].mxu0
      %v376 = vadd.f32 0.0, %v375
      %v377 = vpop.f32.mrb[0].mxu0
      %v378 = vpop.f32.mrb[0].mxu0
      %v379 = vadd.f32 0.0, %v378
      %v380 = vpop.f32.mrb[0].mxu0
      %381 = vmatprep.mubr.bf16.mxu0 0
      %382 = vmatmul.mubr.bf16.gmra.mrb[0].mxu0 %v278
      %v383 = vpop.f32.mrb[0].mxu0
      %v384 = vadd.f32 0.0, %v383
      %v385 = vpop.f32.mrb[0].mxu0
      %v386 = vpop.f32.mrb[0].mxu0
      %v387 = vadd.f32 0.0, %v386
      %v388 = vpop.f32.mrb[0].mxu0
      %389 = vmatprep.mubr.bf16.mxu0 0
      %390 = vmatmul.mubr.bf16.gmra.mrb[0].mxu0 %v281
      %v391 = vpop.f32.mrb[0].mxu0
      %v392 = vadd.f32 0.0, %v391
      %v393 = vpop.f32.mrb[0].mxu0
      %v394 = vpop.f32.mrb[0].mxu0
      %v395 = vadd.f32 0.0, %v394
      %v396 = vpop.f32.mrb[0].mxu0
      %397 = vmatprep.mubr.bf16.mxu0 0
      %398 = vmatmul.mubr.bf16.gmra.mrb[0].mxu0 %v284
      %v399 = vpop.f32.mrb[0].mxu0
      %v400 = vadd.f32 0.0, %v399
      %v401 = vpop.f32.mrb[0].mxu0
      %v402 = vpop.f32.mrb[0].mxu0
      %v403 = vadd.f32 0.0, %v402
      %v404 = vpop.f32.mrb[0].mxu0
      %405 = vmatprep.mubr.bf16.mxu0 0
      %406 = vmatmul.mubr.bf16.gmra.mrb[0].mxu0 %v287
      %v407 = vpop.f32.mrb[0].mxu0
      %v408 = vadd.f32 0.0, %v407
      %v409 = vpop.f32.mrb[0].mxu0
      %v410 = vpop.f32.mrb[0].mxu0
      %v411 = vadd.f32 0.0, %v410
      %v412 = vpop.f32.mrb[0].mxu0
      %413 = vmatprep.mubr.bf16.mxu0 0
      %414 = vmatmul.mubr.bf16.gmra.mrb[0].mxu0 %v290
      %v415 = vpop.f32.mrb[0].mxu0
      %v416 = vadd.f32 0.0, %v415
      %v417 = vpop.f32.mrb[0].mxu0
      %v418 = vpop.f32.mrb[0].mxu0
      %v419 = vadd.f32 0.0, %v418
      %v420 = vpop.f32.mrb[0].mxu0
      %421 = vmatprep.mubr.bf16.mxu0 0
      %422 = vmatmul.mubr.bf16.gmra.mrb[0].mxu0 %v293
      %v423 = vpop.f32.mrb[0].mxu0
      %v424 = vadd.f32 0.0, %v423
      %v425 = vpop.f32.mrb[0].mxu0
      %v426 = vpop.f32.mrb[0].mxu0
      %v427 = vadd.f32 0.0, %v426
      %v428 = vpop.f32.mrb[0].mxu0
      %429 = vmatprep.mubr.bf16.mxu0 0
      %430 = vmatmul.mubr.bf16.gmra.mrb[0].mxu0 %v296
      %v431 = vpop.f32.mrb[0].mxu0
      %v432 = vadd.f32 0.0, %v431
      %v433 = vpop.f32.mrb[0].mxu0
      %v434 = vpop.f32.mrb[0].mxu0
      %v435 = vadd.f32 0.0, %v434
      %v436 = vpop.f32.mrb[0].mxu0
      %437 = vmatprep.mubr.bf16.mxu0 0
      %438 = vmatmul.mubr.bf16.gmra.mrb[0].mxu0 %v299
      %v439 = vpop.f32.mrb[0].mxu0
      %v440 = vadd.f32 0.0, %v439
      %v441 = vpop.f32.mrb[0].mxu0
      %v442 = vpop.f32.mrb[0].mxu0
      %v443 = vadd.f32 0.0, %v442
      %v444 = vpop.f32.mrb[0].mxu0
      %445 = vmatprep.mubr.bf16.mxu0 0
      %446 = vmatmul.mubr.bf16.gmra.mrb[0].mxu0 %v302
      %v447 = vpop.f32.mrb[0].mxu0
      %v448 = vadd.f32 0.0, %v447
      %v449 = vpop.f32.mrb[0].mxu0
      %v450 = vpop.f32.mrb[0].mxu0
      %v451 = vadd.f32 0.0, %v450
      %v452 = vpop.f32.mrb[0].mxu0
      %453 = vmatprep.mubr.bf16.mxu0 0
      %454 = vmatmul.mubr.bf16.gmra.mrb[0].mxu0 %v305
      %v455 = vpop.f32.mrb[0].mxu0
      %v456 = vadd.f32 0.0, %v455
      %v457 = vpop.f32.mrb[0].mxu0
      %v458 = vpop.f32.mrb[0].mxu0
      %v459 = vadd.f32 0.0, %v458
      %v460 = vpop.f32.mrb[0].mxu0
      %461 = vmatprep.mubr.bf16.mxu0 0
      %462 = vmatmul.mubr.bf16.gmra.mrb[0].mxu0 %v308
      %v463 = vpop.f32.mrb[0].mxu0
      %v464 = vadd.f32 0.0, %v463
      %v465 = vpop.f32.mrb[0].mxu0
      %v466 = vpop.f32.mrb[0].mxu0
      %v467 = vadd.f32 0.0, %v466
      %v468 = vpop.f32.mrb[0].mxu0
      %469 = vmatprep.mubr.bf16.mxu0 0
      %470 = vmatmul.mubr.bf16.gmra.mrb[0].mxu0 %v311
      %v471 = vpop.f32.mrb[0].mxu0
      %v472 = vadd.f32 0.0, %v471
      %v473 = vpop.f32.mrb[0].mxu0
      %v474 = vpop.f32.mrb[0].mxu0
      %v475 = vadd.f32 0.0, %v474
      %v476 = vpop.f32.mrb[0].mxu0
      %477 = vdwg.mxu0
      %v478 = vmax.f32 %v352, 0.0
      %v479 = vmax.f32 %v355, 0.0
      %v480 = vmax.f32 %v360, 0.0
      %v481 = vmax.f32 %v363, 0.0
      %v482 = vmax.f32 %v368, 0.0
      %v483 = vmax.f32 %v371, 0.0
      %v484 = vmax.f32 %v376, 0.0
      %v485 = vmax.f32 %v379, 0.0
      %v486 = vmax.f32 %v384, 0.0
      %v487 = vmax.f32 %v387, 0.0
      %v488 = vmax.f32 %v392, 0.0
      %v489 = vmax.f32 %v395, 0.0
      %v490 = vmax.f32 %v400, 0.0
      %v491 = vmax.f32 %v403, 0.0
      %v492 = vmax.f32 %v408, 0.0
      %v493 = vmax.f32 %v411, 0.0
      %v494 = vmax.f32 %v416, 0.0
      %v495 = vmax.f32 %v419, 0.0
      %v496 = vmax.f32 %v424, 0.0
      %v497 = vmax.f32 %v427, 0.0
      %v498 = vmax.f32 %v432, 0.0
      %v499 = vmax.f32 %v435, 0.0
      %v500 = vmax.f32 %v440, 0.0
      %v501 = vmax.f32 %v443, 0.0
      %v502 = vmax.f32 %v448, 0.0
      %v503 = vmax.f32 %v451, 0.0
      %v504 = vmax.f32 %v456, 0.0
      %v505 = vmax.f32 %v459, 0.0
      %v506 = vmax.f32 %v464, 0.0
      %v507 = vmax.f32 %v467, 0.0
      %v508 = vmax.f32 %v472, 0.0
      %v509 = vmax.f32 %v475, 0.0
      %v510 = vpack.c.bf16 %v479, %v478
      %v511 = vpack.c.bf16 %v481, %v480
      %v512 = vpack.c.bf16 %v483, %v482
      %v513 = vpack.c.bf16 %v485, %v484
      %v514 = vpack.c.bf16 %v487, %v486
      %v515 = vpack.c.bf16 %v489, %v488
      %v516 = vpack.c.bf16 %v491, %v490
      %v517 = vpack.c.bf16 %v493, %v492
      %v518 = vpack.c.bf16 %v495, %v494
      %v519 = vpack.c.bf16 %v497, %v496
      %v520 = vpack.c.bf16 %v499, %v498
      %v521 = vpack.c.bf16 %v501, %v500
      %v522 = vpack.c.bf16 %v503, %v502
      %v523 = vpack.c.bf16 %v505, %v504
      %v524 = vpack.c.bf16 %v507, %v506
      %v525 = vpack.c.bf16 %v509, %v508
      %v542 = vunpack.c.l.b16 %v510
      %v543 = vunpack.c.h.b16 %v510
      %v544 = vunpack.c.l.b16 %v511
      %v545 = vunpack.c.h.b16 %v511
      %v546 = vunpack.c.l.b16 %v512
      %v547 = vunpack.c.h.b16 %v512
      %v548 = vunpack.c.l.b16 %v513
      %v549 = vunpack.c.h.b16 %v513
      %v550 = vunpack.c.l.b16 %v514
      %v551 = vunpack.c.h.b16 %v514
      %v552 = vunpack.c.l.b16 %v515
      %v553 = vunpack.c.h.b16 %v515
      %v554 = vunpack.c.l.b16 %v516
      %v555 = vunpack.c.h.b16 %v516
      %v556 = vunpack.c.l.b16 %v517
      %v557 = vunpack.c.h.b16 %v517
      %v558 = vunpack.c.l.b16 %v518
      %v559 = vunpack.c.h.b16 %v518
      %v560 = vunpack.c.l.b16 %v519
      %v561 = vunpack.c.h.b16 %v519
      %v562 = vunpack.c.l.b16 %v520
      %v563 = vunpack.c.h.b16 %v520
      %v564 = vunpack.c.l.b16 %v521
      %v565 = vunpack.c.h.b16 %v521
      %v566 = vunpack.c.l.b16 %v522
      %v567 = vunpack.c.h.b16 %v522
      %v568 = vunpack.c.l.b16 %v523
      %v569 = vunpack.c.h.b16 %v523
      %v570 = vunpack.c.l.b16 %v524
      %v571 = vunpack.c.h.b16 %v524
      %v572 = vunpack.c.l.b16 %v525
      %v573 = vunpack.c.h.b16 %v525
      %v574 = vpack.c.b16 %v542, %v542
      %v575 = vpack.c.b16 %v543, %v543
      %v576 = vpack.c.b16 %v544, %v544
      %v577 = vpack.c.b16 %v545, %v545
      %v578 = vpack.c.b16 %v546, %v546
      %v579 = vpack.c.b16 %v547, %v547
      %v580 = vpack.c.b16 %v548, %v548
      %v581 = vpack.c.b16 %v549, %v549
      %v582 = vpack.c.b16 %v550, %v550
      %v583 = vpack.c.b16 %v551, %v551
      %v584 = vpack.c.b16 %v552, %v552
      %v585 = vpack.c.b16 %v553, %v553
      %v586 = vpack.c.b16 %v554, %v554
      %v587 = vpack.c.b16 %v555, %v555
      %v588 = vpack.c.b16 %v556, %v556
      %v589 = vpack.c.b16 %v557, %v557
      %v590 = vpack.c.b16 %v558, %v558
      %v591 = vpack.c.b16 %v559, %v559
      %v592 = vpack.c.b16 %v560, %v560
      %v593 = vpack.c.b16 %v561, %v561
      %v594 = vpack.c.b16 %v562, %v562
      %v595 = vpack.c.b16 %v563, %v563
      %v596 = vpack.c.b16 %v564, %v564
      %v597 = vpack.c.b16 %v565, %v565
      %v598 = vpack.c.b16 %v566, %v566
      %v599 = vpack.c.b16 %v567, %v567
      %v600 = vpack.c.b16 %v568, %v568
      %v601 = vpack.c.b16 %v569, %v569
      %v602 = vpack.c.b16 %v570, %v570
      %v603 = vpack.c.b16 %v571, %v571
      %v604 = vpack.c.b16 %v572, %v572
      %v605 = vpack.c.b16 %v573, %v573
      %vm638 = vcmask 27648
      %639 = vst.msk [vmem:[%s143] sm:$0xf] %vm638, %v574
      %640 = vst.msk [vmem:[%s143 + $0x4] sm:$0xf] %vm638, %v575
      %641 = vst.msk [vmem:[%s143 + $0x8] sm:$0xf] %vm638, %v576
      %642 = vst.msk [vmem:[%s143 + $0xc] sm:$0xf] %vm638, %v577
      %643 = vst.msk [vmem:[%s143 + $0x10] sm:$0xf] %vm638, %v578
      %644 = vst.msk [vmem:[%s143 + $0x14] sm:$0xf] %vm638, %v579
      %645 = vst.msk [vmem:[%s143 + $0x18] sm:$0xf] %vm638, %v580
      %646 = vst.msk [vmem:[%s143 + $0x1c] sm:$0xf] %vm638, %v581
      %647 = vst.msk [vmem:[%s143 + $0x20] sm:$0xf] %vm638, %v582
      %648 = vst.msk [vmem:[%s143 + $0x24] sm:$0xf] %vm638, %v583
      %649 = vst.msk [vmem:[%s143 + $0x28] sm:$0xf] %vm638, %v584
      %650 = vst.msk [vmem:[%s143 + $0x2c] sm:$0xf] %vm638, %v585
      %651 = vst.msk [vmem:[%s143 + $0x30] sm:$0xf] %vm638, %v586
      %652 = vst.msk [vmem:[%s143 + $0x34] sm:$0xf] %vm638, %v587
      %653 = vst.msk [vmem:[%s143 + $0x38] sm:$0xf] %vm638, %v588
      %654 = vst.msk [vmem:[%s143 + $0x3c] sm:$0xf] %vm638, %v589
      %655 = vst.msk [vmem:[%s143 + $0x40] sm:$0xf] %vm638, %v590
      %656 = vst.msk [vmem:[%s143 + $0x44] sm:$0xf] %vm638, %v591
      %657 = vst.msk [vmem:[%s143 + $0x48] sm:$0xf] %vm638, %v592
      %658 = vst.msk [vmem:[%s143 + $0x4c] sm:$0xf] %vm638, %v593
      %659 = vst.msk [vmem:[%s143 + $0x50] sm:$0xf] %vm638, %v594
      %660 = vst.msk [vmem:[%s143 + $0x54] sm:$0xf] %vm638, %v595
      %661 = vst.msk [vmem:[%s143 + $0x58] sm:$0xf] %vm638, %v596
      %662 = vst.msk [vmem:[%s143 + $0x5c] sm:$0xf] %vm638, %v597
      %663 = vst.msk [vmem:[%s143 + $0x60] sm:$0xf] %vm638, %v598
      %664 = vst.msk [vmem:[%s143 + $0x64] sm:$0xf] %vm638, %v599
      %665 = vst.msk [vmem:[%s143 + $0x68] sm:$0xf] %vm638, %v600
      %666 = vst.msk [vmem:[%s143 + $0x6c] sm:$0xf] %vm638, %v601
      %667 = vst.msk [vmem:[%s143 + $0x70] sm:$0xf] %vm638, %v602
      %668 = vst.msk [vmem:[%s143 + $0x74] sm:$0xf] %vm638, %v603
      %669 = vst.msk [vmem:[%s143 + $0x78] sm:$0xf] %vm638, %v604
      %670 = vst.msk [vmem:[%s143 + $0x7c] sm:$0xf] %vm638, %v605
      %p671 = scmp.lt.s32.totalorder %s13, 1
      %s672 = scalar_select %p671, %s13, 1
      %s673 = smul.addr %s672, 32
      %s674 = smul.addr %s673, 4
      %s675 = scalar_lea.vmem %s2, %s674
      // Predicated region
      $region29: #{tpu_custom_call.1} parent=27 // pred_check
        %p676 = pneg %p78
      $region30: #{tpu_custom_call.1} parent=27 // pred_check_branch
        %678 = sbr.rel (%p676) target = $region32
      $region31: #{tpu_custom_call.1} parent=27 // pred_region
        _
      $region32: #{tpu_custom_call.1} parent=27 // pred_fallthru
        _
    $region28: #{tpu_custom_call.1} parent=5 // pred_fallthru
      _
    %p679 = scmp.le.s32.totalorder 2, %s8
    // Predicated region
    $region33: #{tpu_custom_call.1} parent=5 // pred_check
      %p680 = pneg %p679
    $region34: #{tpu_custom_call.1} parent=5 // pred_check_branch
      %682 = sbr.rel (%p680) target = $region36
    $region35: #{tpu_custom_call.1} parent=5 // pred_region
      %s683 = ssub.s32 %s8, 2
      // Predicated region
      $region37: #{tpu_custom_call.1} parent=35 // pred_check
        %p684 = pneg %p84
      $region38: #{tpu_custom_call.1} parent=35 // pred_check_branch
        %686 = sbr.rel (%p684) target = $region40
      $region39: #{tpu_custom_call.1} parent=35 // pred_region
        %p687 = scmp.lt.s32.totalorder %s14, 1
        %s688 = scalar_select %p687, %s14, 1
        %s689 = smul.addr %s688, 32
        %s690 = smul.addr %s689, 4
        %s691 = scalar_lea.vmem %s2, %s690
      $region40: #{tpu_custom_call.1} parent=35 // pred_fallthru
        _
    $region36: #{tpu_custom_call.1} parent=5 // pred_fallthru
      _
  $region6: #{tpu_custom_call.1} parent=0 // loop_footer
    %s12 = sadd.s32 1, %s8
  $region7: #{tpu_custom_call.1} parent=0 // loop_footer_branch
    %7 = sbr.rel target = $region3
  $region8: #{tpu_custom_call.1} parent=0 // loop_exit
    _

</llo_original>
